<compile_context>
chip_gen: v6e
topology: v6e:2x2x1
jax: 0.10.0
libtpu: 0.0.40
codegen_flags: <defaults>
</compile_context>

<pallas_src>
import jax
import jax.numpy as jnp
from jax.experimental import pallas as pl
from jax.experimental.pallas import tpu as pltpu

# Small, module-consistent shapes.
B = 2                  # batch
L = 16                 # sequence length
CIN = 4                # one-hot DNA channels (A, C, G, T)
K = 5                  # conv kernel width ('same' padding)
C = 32                 # hidden / conv output channels per task
T = 3                  # number of single-task models (model1, model2, model3)
PAD = (K - 1) // 2
CIN_PAD = 8            # channels padded: 4 one-hot + 1 bias channel + 3 zeros
TC = T * C             # 96  (all tasks' channels, fused)
TC_PAD = 128           # padded to one full lane tile
T_PAD = 128            # head output lanes padded to a full lane tile
M = B * L              # 32 rows (multiple of 8 sublanes)
BIAS_PRE = 4.0         # pre-GELU constant lane used to fold the head bias


def multitask_kernel(x_ref, w_ref, hw_ref, out_ref):
    # x_ref : (B, L+2*PAD, CIN_PAD) f32  halo-padded one-hot + always-1 bias channel
    # w_ref : (K, CIN_PAD, TC_PAD)  bf16 fused per-task conv weights
    #                                    (+ conv bias row, + constant pre-GELU lane)
    # hw_ref: (TC_PAD, T_PAD)       f32  block-diagonal per-task head weights
    #                                    (+ head bias folded onto the constant lane)
    # out_ref: (B, T_PAD)           f32  lane-dense; wrapper slices to (B, T)

    # 'same' conv as K shifted-slice MXU matmuls accumulated in f32 (in-kernel
    # im2col: no unfolded copy of x ever touches HBM). Operands cast to bf16
    # for the MXU; one-hot / 0 / 1 values are exact in bf16.
    y = jnp.zeros((M, TC_PAD), jnp.float32)
    for k in range(K):  # K is static -> fully unrolled, static slices
        slab = x_ref[:, k:k + L, :].reshape(M, CIN_PAD).astype(jnp.bfloat16)
        y = y + jnp.dot(slab, w_ref[k], preferred_element_type=jnp.float32)

    # GELU once over the fused result (conv bias already inside y via the bias
    # channel; padded lanes stay exactly 0; lane TC holds BIAS_PRE -> GELU const).
    y = jax.nn.gelu(y, approximate=True)

    # Head BEFORE the pool (M=32 MXU rows instead of 2); head bias enters via
    # the constant lane, so no bias add is needed anywhere. Kept f32 (tiny, and
    # v5e's VPU/EUP have no bf16 for the surrounding ops).
    z = jnp.dot(y, hw_ref[...], preferred_element_type=jnp.float32)   # (M, T_PAD)

    # Global average pool over L: segmented sublane mean, single lane-dense store.
    out_ref[...] = jnp.mean(z.reshape(B, L, T_PAD), axis=1)           # (B, T_PAD)


def prepare_params(conv_w, conv_b, head_w, head_b):
    """One-time fusion/packing of all weight-side plumbing (cache the result).

    conv_w: (T, K, CIN, C), conv_b: (T, C), head_w: (T, C), head_b: (T, 1)
    Returns (w_fused (K, CIN_PAD, TC_PAD) bf16, hw_fused (TC_PAD, T_PAD) f32).
    """
    # Fused conv weights: (T,K,CIN,C) -> (K,CIN,T*C), zero-padded; conv bias
    # lives on the always-1 bias channel (CIN) at the center tap k=PAD; one
    # extra lane (TC) gets the constant BIAS_PRE used to fold the head bias.
    wt = jnp.transpose(conv_w, (1, 2, 0, 3)).reshape(K, CIN, TC)
    w = jnp.zeros((K, CIN_PAD, TC_PAD), jnp.float32)
    w = w.at[:, :CIN, :TC].set(wt)
    w = w.at[PAD, CIN, :TC].set(conv_b.reshape(TC))
    w = w.at[PAD, CIN, TC].set(BIAS_PRE)
    w = w.astype(jnp.bfloat16)                         # MXU-native operand

    # Block-diagonal head weights hw[t*C + j, t] = head_w[t, j]; row TC carries
    # head_b / GELU(BIAS_PRE) so the constant lane injects the head bias.
    g = jax.nn.gelu(jnp.float32(BIAS_PRE), approximate=True)
    eye = jnp.eye(T, dtype=jnp.float32)
    blk = (head_w[:, :, None] * eye[:, None, :]).reshape(TC, T)
    hw = jnp.zeros((TC_PAD, T_PAD), jnp.float32)
    hw = hw.at[:TC, :T].set(blk)
    hw = hw.at[TC, :T].set(head_b.reshape(T) / g)
    return w, hw


@jax.jit
def multitask_forward(x_ncl, w_fused, hw_fused):
    """x_ncl: (B, CIN, L) in PyTorch NCL layout. Returns (B, T) float32."""
    # Per-call plumbing touches only x: transpose, append the always-1 bias
    # channel, halo + channel zero-pad. No im2col / weight ops here.
    x = jnp.transpose(x_ncl, (0, 2, 1)).astype(jnp.float32)           # (B, L, CIN)
    x = jnp.concatenate([x, jnp.ones((B, L, 1), jnp.float32)], -1)    # bias channel
    x = jnp.pad(x, ((0, 0), (PAD, PAD), (0, CIN_PAD - CIN - 1)))      # (B, L+2P, 8)

    # Tiny problem: no grid, no pipelining -- every operand is one VMEM block.
    vmem = pl.BlockSpec(memory_space=pltpu.MemorySpace.VMEM)
    out_padded = pl.pallas_call(
        multitask_kernel,
        out_shape=jax.ShapeDtypeStruct((B, T_PAD), jnp.float32),
        in_specs=[vmem, vmem, vmem],
        out_specs=vmem,
    )(x, w_fused, hw_fused)
    return out_padded[:, :T]                                          # (B, T)


def ref_forward(x_ncl, conv_w, conv_b, head_w, head_b):
    """Plain-JAX f32 reference of the same multi-task forward (per-task towers)."""
    xp = jnp.pad(jnp.transpose(x_ncl, (0, 2, 1)).astype(jnp.float32),
                 ((0, 0), (PAD, PAD), (0, 0)))
    cols = []
    for t in range(T):
        y = jnp.zeros((B, L, C), jnp.float32)
        for k in range(K):
            y = y + jnp.einsum("bld,dc->blc", xp[:, k:k + L, :], conv_w[t, k])
        y = jax.nn.gelu(y + conv_b[t][None, None, :], approximate=True)
        pooled = y.mean(axis=1)
        cols.append(pooled @ head_w[t][:, None] + head_b[t][None, :])
    return jnp.concatenate(cols, axis=1)


if __name__ == "__main__":
    key = jax.random.PRNGKey(0)
    k_idx, k_cw, k_cb, k_hw, k_hb = jax.random.split(key, 5)

    # One-hot DNA input in PyTorch NCL layout: (B, 4, L)
    idx = jax.random.randint(k_idx, (B, L), 0, CIN)
    x_ncl = jnp.transpose(jax.nn.one_hot(idx, CIN, dtype=jnp.float32), (0, 2, 1))

    # Deterministic synthetic parameters for the 3 single-task sub-models.
    conv_w = 0.10 * jax.random.normal(k_cw, (T, K, CIN, C), jnp.float32)
    conv_b = 0.01 * jax.random.normal(k_cb, (T, C), jnp.float32)
    head_w = 0.10 * jax.random.normal(k_hw, (T, C), jnp.float32)
    head_b = 0.01 * jax.random.normal(k_hb, (T, 1), jnp.float32)

    # Weight plumbing computed ONCE (cache / reuse across calls).
    w_fused, hw_fused = prepare_params(conv_w, conv_b, head_w, head_b)

    out = jax.block_until_ready(multitask_forward(x_ncl, w_fused, hw_fused))
    assert out.shape == (B, T) and out.dtype == jnp.float32

    ref = ref_forward(x_ncl, conv_w, conv_b, head_w, head_b)
    # bf16 rounding of the conv weights introduces ~1e-3-level differences vs
    # the f32 reference (input one-hot values are exact in bf16).
    assert jnp.allclose(out, ref, atol=5e-3, rtol=5e-3), (out, ref)

    print("KERNEL_OK")
</pallas_src>

<mosaic_0001>
module attributes {stable_mosaic.version = 11 : i64} {
  func.func @multitask_kernel(%arg0: memref<2x20x8xf32, #tpu.memory_space<vmem>>, %arg1: memref<5x8x128xbf16, #tpu.memory_space<vmem>>, %arg2: memref<128x128xf32, #tpu.memory_space<vmem>>, %arg3: memref<2x128xf32, #tpu.memory_space<vmem>>) attributes {dimension_semantics = [], scalar_prefetch = 0 : i64, scratch_operands = 0 : i64, tpu.core_type = #tpu.core_type<tc>} {
    %cst = arith.constant 0.000000e+00 : f32
    %0 = vector.broadcast %cst : f32 to vector<32x128xf32>
    %c0 = arith.constant 0 : index
    %c0_0 = arith.constant 0 : index
    %c0_1 = arith.constant 0 : index
    %1 = vector.load %arg0[%c0, %c0_0, %c0_1] : memref<2x20x8xf32, #tpu.memory_space<vmem>>, vector<2x16x8xf32>
    %2 = vector.shape_cast %1 : vector<2x16x8xf32> to vector<32x8xf32>
    %3 = arith.truncf %2 : vector<32x8xf32> to vector<32x8xbf16>
    %c0_2 = arith.constant 0 : index
    %c0_3 = arith.constant 0 : index
    %c0_4 = arith.constant 0 : index
    %4 = vector.load %arg1[%c0_2, %c0_3, %c0_4] : memref<5x8x128xbf16, #tpu.memory_space<vmem>>, vector<1x8x128xbf16>
    %5 = vector.shape_cast %4 : vector<1x8x128xbf16> to vector<8x128xbf16>
    %cst_5 = arith.constant dense<0.000000e+00> : vector<32x128xf32>
    %6 = tpu.matmul %3, %5, %cst_5 {dimension_numbers = #tpu.dot_dimension_numbers<[1], [0], [0], [1], [0, 0, 1, 1], [], []>} : vector<32x8xbf16>, vector<8x128xbf16>, vector<32x128xf32> -> vector<32x128xf32>
    %7 = arith.addf %0, %6 : vector<32x128xf32>
    %c0_6 = arith.constant 0 : index
    %c1 = arith.constant 1 : index
    %c0_7 = arith.constant 0 : index
    %8 = vector.load %arg0[%c0_6, %c1, %c0_7] : memref<2x20x8xf32, #tpu.memory_space<vmem>>, vector<2x16x8xf32>
    %9 = vector.shape_cast %8 : vector<2x16x8xf32> to vector<32x8xf32>
    %10 = arith.truncf %9 : vector<32x8xf32> to vector<32x8xbf16>
    %c1_8 = arith.constant 1 : index
    %c0_9 = arith.constant 0 : index
    %c0_10 = arith.constant 0 : index
    %11 = vector.load %arg1[%c1_8, %c0_9, %c0_10] : memref<5x8x128xbf16, #tpu.memory_space<vmem>>, vector<1x8x128xbf16>
    %12 = vector.shape_cast %11 : vector<1x8x128xbf16> to vector<8x128xbf16>
    %cst_11 = arith.constant dense<0.000000e+00> : vector<32x128xf32>
    %13 = tpu.matmul %10, %12, %cst_11 {dimension_numbers = #tpu.dot_dimension_numbers<[1], [0], [0], [1], [0, 0, 1, 1], [], []>} : vector<32x8xbf16>, vector<8x128xbf16>, vector<32x128xf32> -> vector<32x128xf32>
    %14 = arith.addf %7, %13 : vector<32x128xf32>
    %c0_12 = arith.constant 0 : index
    %c2 = arith.constant 2 : index
    %c0_13 = arith.constant 0 : index
    %15 = vector.load %arg0[%c0_12, %c2, %c0_13] : memref<2x20x8xf32, #tpu.memory_space<vmem>>, vector<2x16x8xf32>
    %16 = vector.shape_cast %15 : vector<2x16x8xf32> to vector<32x8xf32>
    %17 = arith.truncf %16 : vector<32x8xf32> to vector<32x8xbf16>
    %c2_14 = arith.constant 2 : index
    %c0_15 = arith.constant 0 : index
    %c0_16 = arith.constant 0 : index
    %18 = vector.load %arg1[%c2_14, %c0_15, %c0_16] : memref<5x8x128xbf16, #tpu.memory_space<vmem>>, vector<1x8x128xbf16>
    %19 = vector.shape_cast %18 : vector<1x8x128xbf16> to vector<8x128xbf16>
    %cst_17 = arith.constant dense<0.000000e+00> : vector<32x128xf32>
    %20 = tpu.matmul %17, %19, %cst_17 {dimension_numbers = #tpu.dot_dimension_numbers<[1], [0], [0], [1], [0, 0, 1, 1], [], []>} : vector<32x8xbf16>, vector<8x128xbf16>, vector<32x128xf32> -> vector<32x128xf32>
    %21 = arith.addf %14, %20 : vector<32x128xf32>
    %c0_18 = arith.constant 0 : index
    %c3 = arith.constant 3 : index
    %c0_19 = arith.constant 0 : index
    %22 = vector.load %arg0[%c0_18, %c3, %c0_19] : memref<2x20x8xf32, #tpu.memory_space<vmem>>, vector<2x16x8xf32>
    %23 = vector.shape_cast %22 : vector<2x16x8xf32> to vector<32x8xf32>
    %24 = arith.truncf %23 : vector<32x8xf32> to vector<32x8xbf16>
    %c3_20 = arith.constant 3 : index
    %c0_21 = arith.constant 0 : index
    %c0_22 = arith.constant 0 : index
    %25 = vector.load %arg1[%c3_20, %c0_21, %c0_22] : memref<5x8x128xbf16, #tpu.memory_space<vmem>>, vector<1x8x128xbf16>
    %26 = vector.shape_cast %25 : vector<1x8x128xbf16> to vector<8x128xbf16>
    %cst_23 = arith.constant dense<0.000000e+00> : vector<32x128xf32>
    %27 = tpu.matmul %24, %26, %cst_23 {dimension_numbers = #tpu.dot_dimension_numbers<[1], [0], [0], [1], [0, 0, 1, 1], [], []>} : vector<32x8xbf16>, vector<8x128xbf16>, vector<32x128xf32> -> vector<32x128xf32>
    %28 = arith.addf %21, %27 : vector<32x128xf32>
    %c0_24 = arith.constant 0 : index
    %c4 = arith.constant 4 : index
    %c0_25 = arith.constant 0 : index
    %29 = vector.load %arg0[%c0_24, %c4, %c0_25] : memref<2x20x8xf32, #tpu.memory_space<vmem>>, vector<2x16x8xf32>
    %30 = vector.shape_cast %29 : vector<2x16x8xf32> to vector<32x8xf32>
    %31 = arith.truncf %30 : vector<32x8xf32> to vector<32x8xbf16>
    %c4_26 = arith.constant 4 : index
    %c0_27 = arith.constant 0 : index
    %c0_28 = arith.constant 0 : index
    %32 = vector.load %arg1[%c4_26, %c0_27, %c0_28] : memref<5x8x128xbf16, #tpu.memory_space<vmem>>, vector<1x8x128xbf16>
    %33 = vector.shape_cast %32 : vector<1x8x128xbf16> to vector<8x128xbf16>
    %cst_29 = arith.constant dense<0.000000e+00> : vector<32x128xf32>
    %34 = tpu.matmul %31, %33, %cst_29 {dimension_numbers = #tpu.dot_dimension_numbers<[1], [0], [0], [1], [0, 0, 1, 1], [], []>} : vector<32x8xbf16>, vector<8x128xbf16>, vector<32x128xf32> -> vector<32x128xf32>
    %35 = arith.addf %28, %34 : vector<32x128xf32>
    %36 = arith.mulf %35, %35 : vector<32x128xf32>
    %37 = arith.mulf %35, %36 : vector<32x128xf32>
    %cst_30 = arith.constant 4.471500e-02 : f32
    %38 = vector.broadcast %cst_30 : f32 to vector<32x128xf32>
    %39 = arith.mulf %38, %37 : vector<32x128xf32>
    %40 = arith.addf %35, %39 : vector<32x128xf32>
    %cst_31 = arith.constant 0.797884583 : f32
    %41 = vector.broadcast %cst_31 : f32 to vector<32x128xf32>
    %42 = arith.mulf %41, %40 : vector<32x128xf32>
    %43 = math.tanh %42 : vector<32x128xf32>
    %cst_32 = arith.constant 1.000000e+00 : f32
    %44 = vector.broadcast %cst_32 : f32 to vector<32x128xf32>
    %45 = arith.addf %44, %43 : vector<32x128xf32>
    %cst_33 = arith.constant 5.000000e-01 : f32
    %46 = vector.broadcast %cst_33 : f32 to vector<32x128xf32>
    %47 = arith.mulf %46, %45 : vector<32x128xf32>
    %48 = arith.mulf %35, %47 : vector<32x128xf32>
    %c0_34 = arith.constant 0 : index
    %c0_35 = arith.constant 0 : index
    %49 = vector.load %arg2[%c0_34, %c0_35] : memref<128x128xf32, #tpu.memory_space<vmem>>, vector<128x128xf32>
    %cst_36 = arith.constant dense<0.000000e+00> : vector<32x128xf32>
    %50 = tpu.matmul %48, %49, %cst_36 {dimension_numbers = #tpu.dot_dimension_numbers<[1], [0], [0], [1], [0, 0, 1, 1], [], []>} : vector<32x128xf32>, vector<128x128xf32>, vector<32x128xf32> -> vector<32x128xf32>
    %51 = vector.shape_cast %50 : vector<32x128xf32> to vector<2x16x128xf32>
    %cst_37 = arith.constant dense<0.000000e+00> : vector<2x128xf32>
    %52 = vector.multi_reduction <add>, %51, %cst_37 [1] : vector<2x16x128xf32> to vector<2x128xf32>
    %cst_38 = arith.constant 1.600000e+01 : f32
    %53 = vector.broadcast %cst_38 : f32 to vector<2x128xf32>
    %54 = arith.divf %52, %53 : vector<2x128xf32>
    %c0_39 = arith.constant 0 : index
    %c0_40 = arith.constant 0 : index
    %55 = vector.load %arg3[%c0_39, %c0_40] : memref<2x128xf32, #tpu.memory_space<vmem>>, vector<2x128xf32>
    tpu.vector_store %arg3[%c0_39, %c0_40], %54 {strides = array<i32>} : memref<2x128xf32, #tpu.memory_space<vmem>>, vector<2x128xf32>,
    return
  }
}

</mosaic_0001>

<llo_original>
// kernel: multitask_forward.1
$region0: #{multitask_forward.1}
  #allocation0 [shape = 'u32[]', space=smem, size = 0x4, offset = 0x4, fixed_abs, tag = 'smem constant byte address 0x4 - core index']
  #allocation1 [shape = 'u32[144,128]{1,0:T(1,128)}', space=vmem, size = 0x12000, scoped, tag = 'internal scratch']
  %s0 = inlined_call_operand.vmem [shape: f32[2,20,8], index: 0, kind: input, shape index: {}]
  %s1 = inlined_call_operand.vmem [shape: bf16[5,8,128], index: 1, kind: input, shape index: {}]
  %s2 = inlined_call_operand.hbm [shape: f32[128,128], index: 2, kind: input, shape index: {}]
  %s3 = inlined_call_operand.hbm [shape: f32[2,128], index: 3, kind: output, shape index: {}]
  %s4 = sld [smem:[#allocation0]]
  $region26: #{multitask_forward.1} parent=0
    _
  %s6 = ssub.s32 1, %s4
  %s7 = scalar_select 0, %s6, %s4
  $region1: #{multitask_forward.1} parent=0
    #allocation2 [shape = 'u8[65536]{0}', space=vmem, size = 0x10000, scoped, tag = 'input window, operand 2, single buffered']
    #allocation3 [shape = 's32[1]{0}', space=sflag, size = 0x4, scoped, tag = 'scoped memory for multitask_forward.1']
    #allocation4 [shape = 's32[1]{0}', space=sflag, size = 0x4, scoped, tag = 'scoped memory for multitask_forward.1']
    #allocation5 [shape = 'u8[1024]{0}', space=vmem, size = 0x400, scoped, tag = 'output window, operand 0, single buffered']
    %8 = vsyncpa [#allocation3], 0
    %9 = vsyncpa [#allocation4], 0
    // Predicated region
    $region2: #{multitask_forward.1} parent=1 // pred_check
      _
    $region3: #{multitask_forward.1} parent=1 // pred_check_branch
      %11 = sbr.rel (0) target = $region5
    $region4: #{multitask_forward.1} parent=1 // pred_region
      _
    $region5: #{multitask_forward.1} parent=1 // pred_fallthru
      _
    // Predicated region
    $region6: #{multitask_forward.1} parent=1 // pred_check
      _
    $region7: #{multitask_forward.1} parent=1 // pred_check_branch
      %13 = sbr.rel (0) target = $region9
    $region8: #{multitask_forward.1} parent=1 // pred_region
      _
    $region9: #{multitask_forward.1} parent=1 // pred_fallthru
      _
    // Predicated region
    $region10: #{multitask_forward.1} parent=1 // pred_check
      _
    $region11: #{multitask_forward.1} parent=1 // pred_check_branch
      %15 = sbr.rel (0) target = $region13
    $region12: #{multitask_forward.1} parent=1 // pred_region
      %s17 = ssub.s32 2048, 2048
      %18 = vsyncadd [#allocation3], %s17
      %s19 = sshll.u32 [#allocation2], 4
      %s20 = int_to_ptr.vmem [resolvable:$true] %s19
      %25 = dma.hbm_to_vmem [thread:$0]  %s2, 2048, %s20, [#allocation3], 128, 128, 8
    $region13: #{multitask_forward.1} parent=1 // pred_fallthru
      _
    // Predicated region
    $region14: #{multitask_forward.1} parent=1 // pred_check
      _
    $region15: #{multitask_forward.1} parent=1 // pred_check_branch
      %27 = sbr.rel (0) target = $region17
    $region16: #{multitask_forward.1} parent=1 // pred_region
      %28 = dma.done [#allocation3], 2048
    $region17: #{multitask_forward.1} parent=1 // pred_fallthru
      _
    %v30 = vld [vmem:[%s0] sm:$0xff]
    %v31 = vld [vmem:[%s0 + $0x8] sm:$0xff]
    %v32 = vld [vmem:[%s0 + $0x18] sm:$0xff]
    %v33 = vld [vmem:[%s0 + $0x20] sm:$0xff]
    %v34 = vpack.c.bf16 %v31, %v30
    %v35 = vpack.c.bf16 %v33, %v32
    %v36 = vld [vmem:[%s1] sm:$0xf]
    %v37 = vld [vmem:[%s0 + $0x1] sm:$0xff]
    %v38 = vld [vmem:[%s0 + $0x9] sm:$0xff]
    %v39 = vld [vmem:[%s0 + $0x19] sm:$0xff]
    %v40 = vld [vmem:[%s0 + $0x21] sm:$0xff]
    %v41 = vpack.c.bf16 %v38, %v37
    %v42 = vpack.c.bf16 %v40, %v39
    %s43 = scalar_lea.vmem %s1, 4
    %v44 = vld [vmem:[%s43] sm:$0xf]
    %vm45 = vcmask 64512
    %v47 = vsel %vm45, %v41, 0
    %v50 = vsel %vm45, %v42, 0
    %vm52 = vcmask 1043456
    %v54 = vsel %vm52, %v44, 0
    %56 = vmatprep.subr.bf16.mxu0 0
    %57 = vmatpush1.bf16.msra.mxu0 0
    %58 = vmatprep.subr.bf16.mxu0 0
    %59 = vmatpush1.bf16.msra.mxu0 0
    %60 = vmatprep.subr.bf16.mxu0 0
    %61 = vmatpush1.bf16.msra.mxu0 0
    %62 = vmatprep.subr.bf16.mxu0 0
    %63 = vmatpush1.bf16.msra.mxu0 0
    %64 = vmatprep.subr.bf16.mxu0 0
    %65 = vmatpush1.bf16.msra.mxu0 0
    %66 = vmatprep.subr.bf16.mxu0 0
    %67 = vmatpush1.bf16.msra.mxu0 0
    %68 = vmatprep.subr.bf16.mxu0 0
    %69 = vmatpush1.bf16.msra.mxu0 0
    %70 = vmatprep.subr.bf16.mxu0 0
    %71 = vmatpush1.bf16.msra.mxu0 %v54
    %72 = vmatprep.subr.bf16.mxu0 0
    %73 = vmatpush2.bf16.msra.mxu0 0
    %74 = vmatprep.subr.bf16.mxu0 0
    %75 = vmatpush2.bf16.msra.mxu0 0
    %76 = vmatprep.subr.bf16.mxu0 0
    %77 = vmatpush2.bf16.msra.mxu0 0
    %78 = vmatprep.subr.bf16.mxu0 0
    %79 = vmatpush2.bf16.msra.mxu0 0
    %80 = vmatprep.subr.bf16.mxu0 0
    %81 = vmatpush2.bf16.msra.mxu0 0
    %82 = vmatprep.subr.bf16.mxu0 0
    %83 = vmatpush2.bf16.msra.mxu0 0
    %84 = vmatprep.subr.bf16.mxu0 0
    %85 = vmatpush2.bf16.msra.mxu0 0
    %86 = vmatprep.subr.bf16.mxu0 0
    %87 = vmatpush2.bf16.msra.mxu0 0
    %88 = vmatprep.mubr.bf16.mxu0 0
    %89 = vmatmul.mubr.bf16.gmra.mxu0 %v47
    %v90 = vpop.f32.mrf.mxu0
    %v91 = vadd.f32 0.0, %v90
    %v92 = vpop.f32.mrf.mxu0
    %v93 = vpop.f32.mrf.mxu0
    %v94 = vadd.f32 0.0, %v93
    %v95 = vpop.f32.mrf.mxu0
    %96 = vmatprep.mubr.bf16.mxu0 0
    %97 = vmatmul.mubr.bf16.gmra.mxu0 %v50
    %v98 = vpop.f32.mrf.mxu0
    %v99 = vadd.f32 0.0, %v98
    %v100 = vpop.f32.mrf.mxu0
    %v101 = vpop.f32.mrf.mxu0
    %v102 = vadd.f32 0.0, %v101
    %v103 = vpop.f32.mrf.mxu0
    %104 = vdwg.mxu0
    %v106 = vsel %vm45, %v34, 0
    %v109 = vsel %vm45, %v35, 0
    %v112 = vsel %vm52, %v36, 0
    %114 = vmatprep.subr.bf16.mxu0 0
    %115 = vmatpush1.bf16.msra.mxu0 0
    %116 = vmatprep.subr.bf16.mxu0 0
    %117 = vmatpush1.bf16.msra.mxu0 0
    %118 = vmatprep.subr.bf16.mxu0 0
    %119 = vmatpush1.bf16.msra.mxu0 0
    %120 = vmatprep.subr.bf16.mxu0 0
    %121 = vmatpush1.bf16.msra.mxu0 0
    %122 = vmatprep.subr.bf16.mxu0 0
    %123 = vmatpush1.bf16.msra.mxu0 0
    %124 = vmatprep.subr.bf16.mxu0 0
    %125 = vmatpush1.bf16.msra.mxu0 0
    %126 = vmatprep.subr.bf16.mxu0 0
    %127 = vmatpush1.bf16.msra.mxu0 0
    %128 = vmatprep.subr.bf16.mxu0 0
    %129 = vmatpush1.bf16.msra.mxu0 %v112
    %130 = vmatprep.subr.bf16.mxu0 0
    %131 = vmatpush2.bf16.msra.mxu0 0
    %132 = vmatprep.subr.bf16.mxu0 0
    %133 = vmatpush2.bf16.msra.mxu0 0
    %134 = vmatprep.subr.bf16.mxu0 0
    %135 = vmatpush2.bf16.msra.mxu0 0
    %136 = vmatprep.subr.bf16.mxu0 0
    %137 = vmatpush2.bf16.msra.mxu0 0
    %138 = vmatprep.subr.bf16.mxu0 0
    %139 = vmatpush2.bf16.msra.mxu0 0
    %140 = vmatprep.subr.bf16.mxu0 0
    %141 = vmatpush2.bf16.msra.mxu0 0
    %142 = vmatprep.subr.bf16.mxu0 0
    %143 = vmatpush2.bf16.msra.mxu0 0
    %144 = vmatprep.subr.bf16.mxu0 0
    %145 = vmatpush2.bf16.msra.mxu0 0
    %146 = vmatprep.mubr.bf16.mxu0 0
    %147 = vmatmul.mubr.bf16.gmra.mxu0 %v106
    %v148 = vpop.f32.mrf.mxu0
    %v149 = vadd.f32 %v91, %v148
    %v150 = vpop.f32.mrf.mxu0
    %v151 = vpop.f32.mrf.mxu0
    %v152 = vadd.f32 %v94, %v151
    %v153 = vpop.f32.mrf.mxu0
    %154 = vmatprep.mubr.bf16.mxu0 0
    %155 = vmatmul.mubr.bf16.gmra.mxu0 %v109
    %v156 = vpop.f32.mrf.mxu0
    %v157 = vadd.f32 %v99, %v156
    %v158 = vpop.f32.mrf.mxu0
    %v159 = vpop.f32.mrf.mxu0
    %v160 = vadd.f32 %v102, %v159
    %v161 = vpop.f32.mrf.mxu0
    %162 = vdwg.mxu0
    %v163 = vld [vmem:[%s0 + $0x2] sm:$0xff]
    %v164 = vld [vmem:[%s0 + $0xa] sm:$0xff]
    %v165 = vld [vmem:[%s0 + $0x1a] sm:$0xff]
    %v166 = vld [vmem:[%s0 + $0x22] sm:$0xff]
    %v167 = vpack.c.bf16 %v164, %v163
    %v168 = vpack.c.bf16 %v166, %v165
    %s169 = scalar_lea.vmem %s1, 8
    %v170 = vld [vmem:[%s169] sm:$0xf]
    %v172 = vsel %vm45, %v167, 0
    %v175 = vsel %vm45, %v168, 0
    %v178 = vsel %vm52, %v170, 0
    %180 = vmatprep.subr.bf16.mxu0 0
    %181 = vmatpush1.bf16.msra.mxu0 0
    %182 = vmatprep.subr.bf16.mxu0 0
    %183 = vmatpush1.bf16.msra.mxu0 0
    %184 = vmatprep.subr.bf16.mxu0 0
    %185 = vmatpush1.bf16.msra.mxu0 0
    %186 = vmatprep.subr.bf16.mxu0 0
    %187 = vmatpush1.bf16.msra.mxu0 0
    %188 = vmatprep.subr.bf16.mxu0 0
    %189 = vmatpush1.bf16.msra.mxu0 0
    %190 = vmatprep.subr.bf16.mxu0 0
    %191 = vmatpush1.bf16.msra.mxu0 0
    %192 = vmatprep.subr.bf16.mxu0 0
    %193 = vmatpush1.bf16.msra.mxu0 0
    %194 = vmatprep.subr.bf16.mxu0 0
    %195 = vmatpush1.bf16.msra.mxu0 %v178
    %196 = vmatprep.subr.bf16.mxu0 0
    %197 = vmatpush2.bf16.msra.mxu0 0
    %198 = vmatprep.subr.bf16.mxu0 0
    %199 = vmatpush2.bf16.msra.mxu0 0
    %200 = vmatprep.subr.bf16.mxu0 0
    %201 = vmatpush2.bf16.msra.mxu0 0
    %202 = vmatprep.subr.bf16.mxu0 0
    %203 = vmatpush2.bf16.msra.mxu0 0
    %204 = vmatprep.subr.bf16.mxu0 0
    %205 = vmatpush2.bf16.msra.mxu0 0
    %206 = vmatprep.subr.bf16.mxu0 0
    %207 = vmatpush2.bf16.msra.mxu0 0
    %208 = vmatprep.subr.bf16.mxu0 0
    %209 = vmatpush2.bf16.msra.mxu0 0
    %210 = vmatprep.subr.bf16.mxu0 0
    %211 = vmatpush2.bf16.msra.mxu0 0
    %212 = vmatprep.mubr.bf16.mxu0 0
    %213 = vmatmul.mubr.bf16.gmra.mxu0 %v172
    %v214 = vpop.f32.mrf.mxu0
    %v215 = vadd.f32 0.0, %v214
    %v216 = vpop.f32.mrf.mxu0
    %v217 = vpop.f32.mrf.mxu0
    %v218 = vadd.f32 0.0, %v217
    %v219 = vpop.f32.mrf.mxu0
    %220 = vmatprep.mubr.bf16.mxu0 0
    %221 = vmatmul.mubr.bf16.gmra.mxu0 %v175
    %v222 = vpop.f32.mrf.mxu0
    %v223 = vadd.f32 0.0, %v222
    %v224 = vpop.f32.mrf.mxu0
    %v225 = vpop.f32.mrf.mxu0
    %v226 = vadd.f32 0.0, %v225
    %v227 = vpop.f32.mrf.mxu0
    %228 = vdwg.mxu0
    %v229 = vadd.f32 %v149, %v215
    %v230 = vadd.f32 %v152, %v218
    %v231 = vadd.f32 %v157, %v223
    %v232 = vadd.f32 %v160, %v226
    %v233 = vld [vmem:[%s0 + $0x3] sm:$0xff]
    %v234 = vld [vmem:[%s0 + $0xb] sm:$0xff]
    %v235 = vld [vmem:[%s0 + $0x1b] sm:$0xff]
    %v236 = vld [vmem:[%s0 + $0x23] sm:$0xff]
    %v237 = vpack.c.bf16 %v234, %v233
    %v238 = vpack.c.bf16 %v236, %v235
    %s239 = scalar_lea.vmem %s1, 12
    %v240 = vld [vmem:[%s239] sm:$0xf]
    %v242 = vsel %vm45, %v237, 0
    %v245 = vsel %vm45, %v238, 0
    %v248 = vsel %vm52, %v240, 0
    %250 = vmatprep.subr.bf16.mxu0 0
    %251 = vmatpush1.bf16.msra.mxu0 0
    %252 = vmatprep.subr.bf16.mxu0 0
    %253 = vmatpush1.bf16.msra.mxu0 0
    %254 = vmatprep.subr.bf16.mxu0 0
    %255 = vmatpush1.bf16.msra.mxu0 0
    %256 = vmatprep.subr.bf16.mxu0 0
    %257 = vmatpush1.bf16.msra.mxu0 0
    %258 = vmatprep.subr.bf16.mxu0 0
    %259 = vmatpush1.bf16.msra.mxu0 0
    %260 = vmatprep.subr.bf16.mxu0 0
    %261 = vmatpush1.bf16.msra.mxu0 0
    %262 = vmatprep.subr.bf16.mxu0 0
    %263 = vmatpush1.bf16.msra.mxu0 0
    %264 = vmatprep.subr.bf16.mxu0 0
    %265 = vmatpush1.bf16.msra.mxu0 %v248
    %266 = vmatprep.subr.bf16.mxu0 0
    %267 = vmatpush2.bf16.msra.mxu0 0
    %268 = vmatprep.subr.bf16.mxu0 0
    %269 = vmatpush2.bf16.msra.mxu0 0
    %270 = vmatprep.subr.bf16.mxu0 0
    %271 = vmatpush2.bf16.msra.mxu0 0
    %272 = vmatprep.subr.bf16.mxu0 0
    %273 = vmatpush2.bf16.msra.mxu0 0
    %274 = vmatprep.subr.bf16.mxu0 0
    %275 = vmatpush2.bf16.msra.mxu0 0
    %276 = vmatprep.subr.bf16.mxu0 0
    %277 = vmatpush2.bf16.msra.mxu0 0
    %278 = vmatprep.subr.bf16.mxu0 0
    %279 = vmatpush2.bf16.msra.mxu0 0
    %280 = vmatprep.subr.bf16.mxu0 0
    %281 = vmatpush2.bf16.msra.mxu0 0
    %282 = vmatprep.mubr.bf16.mxu0 0
    %283 = vmatmul.mubr.bf16.gmra.mxu0 %v242
    %v284 = vpop.f32.mrf.mxu0
    %v285 = vadd.f32 0.0, %v284
    %v286 = vpop.f32.mrf.mxu0
    %v287 = vpop.f32.mrf.mxu0
    %v288 = vadd.f32 0.0, %v287
    %v289 = vpop.f32.mrf.mxu0
    %290 = vmatprep.mubr.bf16.mxu0 0
    %291 = vmatmul.mubr.bf16.gmra.mxu0 %v245
    %v292 = vpop.f32.mrf.mxu0
    %v293 = vadd.f32 0.0, %v292
    %v294 = vpop.f32.mrf.mxu0
    %v295 = vpop.f32.mrf.mxu0
    %v296 = vadd.f32 0.0, %v295
    %v297 = vpop.f32.mrf.mxu0
    %298 = vdwg.mxu0
    %v299 = vadd.f32 %v229, %v285
    %v300 = vadd.f32 %v230, %v288
    %v301 = vadd.f32 %v231, %v293
    %v302 = vadd.f32 %v232, %v296
    %v303 = vld [vmem:[%s0 + $0x4] sm:$0xff]
    %v304 = vld [vmem:[%s0 + $0xc] sm:$0xff]
    %v305 = vld [vmem:[%s0 + $0x1c] sm:$0xff]
    %v306 = vld [vmem:[%s0 + $0x24] sm:$0xff]
    %v307 = vpack.c.bf16 %v304, %v303
    %v308 = vpack.c.bf16 %v306, %v305
    %s309 = scalar_lea.vmem %s1, 16
    %v310 = vld [vmem:[%s309] sm:$0xf]
    %v312 = vsel %vm45, %v307, 0
    %v315 = vsel %vm45, %v308, 0
    %v318 = vsel %vm52, %v310, 0
    %320 = vmatprep.subr.bf16.mxu0 0
    %321 = vmatpush1.bf16.msra.mxu0 0
    %322 = vmatprep.subr.bf16.mxu0 0
    %323 = vmatpush1.bf16.msra.mxu0 0
    %324 = vmatprep.subr.bf16.mxu0 0
    %325 = vmatpush1.bf16.msra.mxu0 0
    %326 = vmatprep.subr.bf16.mxu0 0
    %327 = vmatpush1.bf16.msra.mxu0 0
    %328 = vmatprep.subr.bf16.mxu0 0
    %329 = vmatpush1.bf16.msra.mxu0 0
    %330 = vmatprep.subr.bf16.mxu0 0
    %331 = vmatpush1.bf16.msra.mxu0 0
    %332 = vmatprep.subr.bf16.mxu0 0
    %333 = vmatpush1.bf16.msra.mxu0 0
    %334 = vmatprep.subr.bf16.mxu0 0
    %335 = vmatpush1.bf16.msra.mxu0 %v318
    %336 = vmatprep.subr.bf16.mxu0 0
    %337 = vmatpush2.bf16.msra.mxu0 0
    %338 = vmatprep.subr.bf16.mxu0 0
    %339 = vmatpush2.bf16.msra.mxu0 0
    %340 = vmatprep.subr.bf16.mxu0 0
    %341 = vmatpush2.bf16.msra.mxu0 0
    %342 = vmatprep.subr.bf16.mxu0 0
    %343 = vmatpush2.bf16.msra.mxu0 0
    %344 = vmatprep.subr.bf16.mxu0 0
    %345 = vmatpush2.bf16.msra.mxu0 0
    %346 = vmatprep.subr.bf16.mxu0 0
    %347 = vmatpush2.bf16.msra.mxu0 0
    %348 = vmatprep.subr.bf16.mxu0 0
    %349 = vmatpush2.bf16.msra.mxu0 0
    %350 = vmatprep.subr.bf16.mxu0 0
    %351 = vmatpush2.bf16.msra.mxu0 0
    %352 = vmatprep.mubr.bf16.mxu0 0
    %353 = vmatmul.mubr.bf16.gmra.mxu0 %v312
    %v354 = vpop.f32.mrf.mxu0
    %v355 = vadd.f32 0.0, %v354
    %v356 = vpop.f32.mrf.mxu0
    %v357 = vpop.f32.mrf.mxu0
    %v358 = vadd.f32 0.0, %v357
    %v359 = vpop.f32.mrf.mxu0
    %360 = vmatprep.mubr.bf16.mxu0 0
    %361 = vmatmul.mubr.bf16.gmra.mxu0 %v315
    %v362 = vpop.f32.mrf.mxu0
    %v363 = vadd.f32 0.0, %v362
    %v364 = vpop.f32.mrf.mxu0
    %v365 = vpop.f32.mrf.mxu0
    %v366 = vadd.f32 0.0, %v365
    %v367 = vpop.f32.mrf.mxu0
    %368 = vdwg.mxu0
    %v369 = vadd.f32 %v299, %v355
    %v370 = vadd.f32 %v300, %v358
    %v371 = vadd.f32 %v301, %v363
    %v372 = vadd.f32 %v302, %v366
    %v373 = vmul.f32 %v369, %v369
    %v374 = vmul.f32 %v370, %v370
    %v375 = vmul.f32 %v371, %v371
    %v376 = vmul.f32 %v372, %v372
    %v377 = vmul.f32 %v369, %v373
    %v378 = vmul.f32 %v370, %v374
    %v379 = vmul.f32 %v371, %v375
    %v380 = vmul.f32 %v372, %v376
    %v381 = vmul.f32 %v377, 0.044715
    %v382 = vmul.f32 %v378, 0.044715
    %v383 = vmul.f32 %v379, 0.044715
    %v384 = vmul.f32 %v380, 0.044715
    %v385 = vadd.f32 %v369, %v381
    %v386 = vadd.f32 %v370, %v382
    %v387 = vadd.f32 %v371, %v383
    %v388 = vadd.f32 %v372, %v384
    %v389 = vmul.f32 %v385, 0.7978846
    %v390 = vmul.f32 %v386, 0.7978846
    %v391 = vmul.f32 %v387, 0.7978846
    %v392 = vmul.f32 %v388, 0.7978846
    %v393 = vtanh.pop %v389
    %v394 = vtanh.pop %v390
    %v395 = vtanh.pop %v391
    %v396 = vtanh.pop %v392
    %v397 = vadd.f32 %v393, 1.0
    %v398 = vadd.f32 %v394, 1.0
    %v399 = vadd.f32 %v395, 1.0
    %v400 = vadd.f32 %v396, 1.0
    %v401 = vmul.f32 %v397, 0.5
    %v402 = vmul.f32 %v398, 0.5
    %v403 = vmul.f32 %v399, 0.5
    %v404 = vmul.f32 %v400, 0.5
    %v405 = vmul.f32 %v369, %v401
    %v406 = vmul.f32 %v370, %v402
    %v407 = vmul.f32 %v371, %v403
    %v408 = vmul.f32 %v372, %v404
    %v409 = vld [vmem:[#allocation2] sm:$0xff]
    %v410 = vld [vmem:[#allocation2 + $0x8] sm:$0xff]
    %v411 = vld [vmem:[#allocation2 + $0x10] sm:$0xff]
    %v412 = vld [vmem:[#allocation2 + $0x18] sm:$0xff]
    %v413 = vld [vmem:[#allocation2 + $0x20] sm:$0xff]
    %v414 = vld [vmem:[#allocation2 + $0x28] sm:$0xff]
    %v415 = vld [vmem:[#allocation2 + $0x30] sm:$0xff]
    %v416 = vld [vmem:[#allocation2 + $0x38] sm:$0xff]
    %v417 = vld [vmem:[#allocation2 + $0x40] sm:$0xff]
    %v418 = vld [vmem:[#allocation2 + $0x48] sm:$0xff]
    %v419 = vld [vmem:[#allocation2 + $0x50] sm:$0xff]
    %v420 = vld [vmem:[#allocation2 + $0x58] sm:$0xff]
    %v421 = vld [vmem:[#allocation2 + $0x60] sm:$0xff]
    %v422 = vld [vmem:[#allocation2 + $0x68] sm:$0xff]
    %v423 = vld [vmem:[#allocation2 + $0x70] sm:$0xff]
    %v424 = vld [vmem:[#allocation2 + $0x78] sm:$0xff]
    %425 = vmatprep.subr.mxu0 0.0
    %426 = vmatpush1.msra.mxu0 %v424
    %427 = vmatprep.subr.mxu0 0.0
    %428 = vmatpush1.msra.mxu0 %v423
    %429 = vmatprep.subr.mxu0 0.0
    %430 = vmatpush1.msra.mxu0 %v422
    %431 = vmatprep.subr.mxu0 0.0
    %432 = vmatpush1.msra.mxu0 %v421
    %433 = vmatprep.subr.mxu0 0.0
    %434 = vmatpush1.msra.mxu0 %v420
    %435 = vmatprep.subr.mxu0 0.0
    %436 = vmatpush1.msra.mxu0 %v419
    %437 = vmatprep.subr.mxu0 0.0
    %438 = vmatpush1.msra.mxu0 %v418
    %439 = vmatprep.subr.mxu0 0.0
    %440 = vmatpush1.msra.mxu0 %v417
    %441 = vmatprep.subr.mxu0 0.0
    %442 = vmatpush1.msra.mxu0 %v416
    %443 = vmatprep.subr.mxu0 0.0
    %444 = vmatpush1.msra.mxu0 %v415
    %445 = vmatprep.subr.mxu0 0.0
    %446 = vmatpush1.msra.mxu0 %v414
    %447 = vmatprep.subr.mxu0 0.0
    %448 = vmatpush1.msra.mxu0 %v413
    %449 = vmatprep.subr.mxu0 0.0
    %450 = vmatpush1.msra.mxu0 %v412
    %451 = vmatprep.subr.mxu0 0.0
    %452 = vmatpush1.msra.mxu0 %v411
    %453 = vmatprep.subr.mxu0 0.0
    %454 = vmatpush1.msra.mxu0 %v410
    %455 = vmatprep.subr.mxu0 0.0
    %456 = vmatpush1.msra.mxu0 %v409
    %457 = vmatprep.subr.mxu0 0.0
    %458 = vmatpush2.msra.mxu0 0.0
    %459 = vmatprep.subr.mxu0 0.0
    %460 = vmatpush2.msra.mxu0 0.0
    %461 = vmatprep.subr.mxu0 0.0
    %462 = vmatpush2.msra.mxu0 0.0
    %463 = vmatprep.subr.mxu0 0.0
    %464 = vmatpush2.msra.mxu0 0.0
    %465 = vmatprep.subr.mxu0 0.0
    %466 = vmatpush2.msra.mxu0 0.0
    %467 = vmatprep.subr.mxu0 0.0
    %468 = vmatpush2.msra.mxu0 0.0
    %469 = vmatprep.subr.mxu0 0.0
    %470 = vmatpush2.msra.mxu0 0.0
    %471 = vmatprep.subr.mxu0 0.0
    %472 = vmatpush2.msra.mxu0 0.0
    %473 = vmatprep.subr.mxu0 0.0
    %474 = vmatpush2.msra.mxu0 0.0
    %475 = vmatprep.subr.mxu0 0.0
    %476 = vmatpush2.msra.mxu0 0.0
    %477 = vmatprep.subr.mxu0 0.0
    %478 = vmatpush2.msra.mxu0 0.0
    %479 = vmatprep.subr.mxu0 0.0
    %480 = vmatpush2.msra.mxu0 0.0
    %481 = vmatprep.subr.mxu0 0.0
    %482 = vmatpush2.msra.mxu0 0.0
    %483 = vmatprep.subr.mxu0 0.0
    %484 = vmatpush2.msra.mxu0 0.0
    %485 = vmatprep.subr.mxu0 0.0
    %486 = vmatpush2.msra.mxu0 0.0
    %487 = vmatprep.subr.mxu0 0.0
    %488 = vmatpush2.msra.mxu0 0.0
    %489 = vmatprep.mubr.f32.mxu0 0.0
    %490 = vmatmul.mubr.f32.gmra.mxu0 %v405
    %v491 = vpop.f32.mrf.mxu0
    %v492 = vadd.f32 0.0, %v491
    %v493 = vpop.f32.mrf.mxu0
    %494 = vmatprep.mubr.f32.mxu0 0.0
    %495 = vmatmul.mubr.f32.gmra.mxu0 %v406
    %v496 = vpop.f32.mrf.mxu0
    %v497 = vadd.f32 0.0, %v496
    %v498 = vpop.f32.mrf.mxu0
    %499 = vmatprep.mubr.f32.mxu0 0.0
    %500 = vmatmul.mubr.f32.gmra.mxu0 %v407
    %v501 = vpop.f32.mrf.mxu0
    %v502 = vadd.f32 0.0, %v501
    %v503 = vpop.f32.mrf.mxu0
    %504 = vmatprep.mubr.f32.mxu0 0.0
    %505 = vmatmul.mubr.f32.gmra.mxu0 %v408
    %v506 = vpop.f32.mrf.mxu0
    %v507 = vadd.f32 0.0, %v506
    %v508 = vpop.f32.mrf.mxu0
    %509 = vdwg.mxu0
    %v510 = vadd.f32 %v492, %v497
    %v511 = vrot.slane %v510, 4
    %v512 = vadd.f32 %v510, %v511
    %v513 = vrot.slane %v512, 2
    %v514 = vadd.f32 %v512, %v513
    %v515 = vrot.slane %v514, 1
    %v516 = vadd.f32 %v514, %v515
    %v517 = vadd.f32 %v502, %v507
    %v518 = vrot.slane %v517, 4
    %v519 = vadd.f32 %v517, %v518
    %v520 = vrot.slane %v519, 2
    %v521 = vadd.f32 %v519, %v520
    %v522 = vrot.slane %v521, 1
    %v523 = vadd.f32 %v521, %v522
    %v524 = vrcp.pop 16.0
    %v525 = vmul.f32 %v516, %v524
    %v526 = vmul.f32 %v523, %v524
    %vm529 = vcmask 1041409
    %v530 = vsel %vm529, %v526, %v525
    %532 = vst [vmem:[#allocation5] sm:$0x3] %v530
    // Predicated region
    $region18: #{multitask_forward.1} parent=1 // pred_check
      _
    $region19: #{multitask_forward.1} parent=1 // pred_check_branch
      %534 = sbr.rel (0) target = $region21
    $region20: #{multitask_forward.1} parent=1 // pred_region
      %s536 = ssub.s32 32, 32
      %537 = vsyncadd [#allocation4], %s536
      %s539 = sshll.u32 [#allocation5], 4
      %s540 = int_to_ptr.vmem [resolvable:$true] %s539
      %542 = dma.vmem_to_hbm [thread:$0]  %s540, 32, %s3, [#allocation4]
    $region21: #{multitask_forward.1} parent=1 // pred_fallthru
      _
    // Predicated region
    $region22: #{multitask_forward.1} parent=1 // pred_check
      _
    $region23: #{multitask_forward.1} parent=1 // pred_check_branch
      %544 = sbr.rel (0) target = $region25
    $region24: #{multitask_forward.1} parent=1 // pred_region
      %545 = dma.done [#allocation4], 32
    $region25: #{multitask_forward.1} parent=1 // pred_fallthru
      _
    %546 = vsyncpa [#allocation3], 1
    %547 = vsyncpa [#allocation4], 1

</llo_original>
